<compile_context>
chip_gen: v7x
topology: tpu7x:2x2x1
jax: 0.10.0
libtpu: 0.0.40
codegen_flags: <defaults>
</compile_context>

<pallas_src>
import math
from functools import partial

import jax
import jax.numpy as jnp
from jax import lax
from jax.experimental import pallas as pl
from jax.experimental.pallas import tpu as pltpu


def mhsa_kernel(xq_ref, xkv_ref, wq_ref, wk_ref, wv_ref,
                bq_ref, bk_ref, bv_ref, wout_ref, bout_ref,
                o_ref,
                q_sc, m_sc, l_sc, acc_sc, out_sc,
                *, scale):
    h = pl.program_id(1)
    kv = pl.program_id(2)
    nh = pl.num_programs(1)
    nkv = pl.num_programs(2)

    # --- init the (N, C) output-projection accumulator once per batch tile ---
    @pl.when(jnp.logical_and(h == 0, kv == 0))
    def _():
        out_sc[...] = jnp.zeros_like(out_sc)

    # --- per-head init: project Q once (scale folded into q), reset softmax ---
    @pl.when(kv == 0)
    def _():
        q = jnp.dot(xq_ref[...], wq_ref[...],
                    preferred_element_type=jnp.float32) + bq_ref[...]   # (N, hd) f32
        q_sc[...] = (q * scale).astype(q_sc.dtype)                      # bf16 for MXU
        m_sc[...] = jnp.full_like(m_sc, -jnp.inf)
        l_sc[...] = jnp.zeros_like(l_sc)
        acc_sc[...] = jnp.zeros_like(acc_sc)

    # --- K/V projection for this KV block (bf16 MXU inputs, f32 accum) ---
    xb = xkv_ref[...]                                                   # (tk, C) bf16
    k = jnp.dot(xb, wk_ref[...],
                preferred_element_type=jnp.float32) + bk_ref[...]       # (tk, hd) f32
    v = jnp.dot(xb, wv_ref[...],
                preferred_element_type=jnp.float32) + bv_ref[...]       # (tk, hd) f32

    # scores: contract the last dim of both operands — no explicit k.T transpose.
    s = lax.dot_general(q_sc[...], k.astype(q_sc.dtype),
                        (((1,), (1,)), ((), ())),
                        preferred_element_type=jnp.float32)             # (N, tk)

    # --- online softmax update (f32 on the VPU/EUP) ---
    m_new = jnp.maximum(m_sc[...], jnp.max(s, axis=-1, keepdims=True))
    alpha = jnp.exp(m_sc[...] - m_new)
    p = jnp.exp(s - m_new)
    l_sc[...] = alpha * l_sc[...] + jnp.sum(p, axis=-1, keepdims=True)
    acc_sc[...] = alpha * acc_sc[...] + jnp.dot(
        p.astype(jnp.bfloat16), v.astype(jnp.bfloat16),
        preferred_element_type=jnp.float32)                             # (N, hd)
    m_sc[...] = m_new

    # --- per-head finalize: normalize and fold through this head's slice of
    #     the output projection, accumulating into the (N, C) scratch ---
    @pl.when(kv == nkv - 1)
    def _():
        ctx = acc_sc[...] * pl.reciprocal(l_sc[...], approx=True)       # (N, hd) f32
        out_sc[...] += jnp.dot(ctx.astype(jnp.bfloat16), wout_ref[...],
                               preferred_element_type=jnp.float32)      # (N, C)

    # --- write the batch tile once, after the last head / last KV block ---
    @pl.when(jnp.logical_and(h == nh - 1, kv == nkv - 1))
    def _():
        o_ref[...] = (out_sc[...] + bout_ref[...]).astype(o_ref.dtype)


def multi_head_self_attention(x, wqkv_t, bqkv, wout_t, bout, *, num_heads,
                              kv_block=512):
    B, N, C = x.shape
    H = num_heads
    hd = C // H

    # KV block size: full sequence if small, else 512-row blocks.
    tk = N if N <= kv_block else kv_block
    assert N % tk == 0, "sequence length must be divisible by the KV block size"
    nkv = N // tk
    # TODO(synk): for very long sequences also tile the Q axis (extra grid dim)
    # so the (N, tk) scores block and (N, C) accumulator stay small on v7x.

    # ----- wrapper-side layout plumbing: split weights per head, cast to bf16 -----
    w3 = wqkv_t.reshape(C, 3, H, hd)                       # 3C columns = [3, H, hd]
    wq = jnp.transpose(w3[:, 0], (1, 0, 2)).astype(jnp.bfloat16)   # (H, C, hd)
    wk = jnp.transpose(w3[:, 1], (1, 0, 2)).astype(jnp.bfloat16)
    wv = jnp.transpose(w3[:, 2], (1, 0, 2)).astype(jnp.bfloat16)
    b3 = bqkv.reshape(3, H, 1, hd).astype(jnp.float32)
    bq, bk, bv = b3[0], b3[1], b3[2]                       # (H, 1, hd) each, f32
    wo = wout_t.reshape(H, hd, C).astype(jnp.bfloat16)     # (H, hd, C)
    bo = bout.astype(jnp.float32)                          # (1, C)
    xb = x.astype(jnp.bfloat16)                            # bf16 MXU inputs, half DMA

    scale = 1.0 / math.sqrt(hd)
    kernel = partial(mhsa_kernel, scale=scale)

    head_spec = lambda b, h, kv: (h, 0, 0)
    return pl.pallas_call(
        kernel,
        out_shape=jax.ShapeDtypeStruct((B, N, C), x.dtype),
        grid_spec=pltpu.PrefetchScalarGridSpec(
            num_scalar_prefetch=0,
            grid=(B, H, nkv),
            in_specs=[
                pl.BlockSpec((None, N, C), lambda b, h, kv: (b, 0, 0)),    # x (for Q)
                pl.BlockSpec((None, tk, C), lambda b, h, kv: (b, kv, 0)),  # x KV block
                pl.BlockSpec((None, C, hd), head_spec),                    # Wq[h]
                pl.BlockSpec((None, C, hd), head_spec),                    # Wk[h]
                pl.BlockSpec((None, C, hd), head_spec),                    # Wv[h]
                pl.BlockSpec((None, 1, hd), head_spec),                    # bq[h]
                pl.BlockSpec((None, 1, hd), head_spec),                    # bk[h]
                pl.BlockSpec((None, 1, hd), head_spec),                    # bv[h]
                pl.BlockSpec((None, hd, C), head_spec),                    # Wout[h]
                pl.BlockSpec((1, C), lambda b, h, kv: (0, 0)),             # bout
            ],
            out_specs=pl.BlockSpec((None, N, C), lambda b, h, kv: (b, 0, 0)),
            scratch_shapes=[
                pltpu.VMEM((N, hd), jnp.bfloat16),   # scaled q for this head
                pltpu.VMEM((N, 1), jnp.float32),     # running max
                pltpu.VMEM((N, 1), jnp.float32),     # running denom
                pltpu.VMEM((N, hd), jnp.float32),    # attn @ v accumulator
                pltpu.VMEM((N, C), jnp.float32),     # output-projection accumulator
            ]),
        compiler_params=pltpu.CompilerParams(
            dimension_semantics=("parallel", "arbitrary", "arbitrary"),
            vmem_limit_bytes=32 * 1024 * 1024),
    )(xb, xb, wq, wk, wv, bq, bk, bv, wo, bo)


def reference(x, wqkv_t, bqkv, wout_t, bout, *, num_heads):
    # Pure-JAX f32 replica of the PyTorch forward, used only to sanity-check.
    B, N, C = x.shape
    hd = C // num_heads
    qkv = x @ wqkv_t + bqkv[0]                                 # (B, N, 3C)
    qkv = qkv.reshape(B, N, 3, num_heads, hd).transpose(2, 0, 3, 1, 4)
    q, k, v = qkv[0], qkv[1], qkv[2]                           # (B, H, N, hd)
    scores = jnp.einsum("bhqd,bhkd->bhqk", q, k) / math.sqrt(hd)
    attn = jax.nn.softmax(scores, axis=-1)
    ctx = jnp.einsum("bhqk,bhkd->bhqd", attn, v)               # (B, H, N, hd)
    ctx = ctx.transpose(0, 2, 1, 3).reshape(B, N, C)
    return ctx @ wout_t + bout[0]


if __name__ == "__main__":
    # Small shapes consistent with the module: B=2, N=8 (seq), C=32 (embed), 4 heads.
    B, N, C = 2, 8, 32
    num_heads = 4

    key = jax.random.PRNGKey(0)
    kx, kw1, kb1, kw2, kb2 = jax.random.split(key, 5)

    x = jax.random.normal(kx, (B, N, C), dtype=jnp.float32)

    # nn.Linear(embed_dim, 3*embed_dim): weight (3C, C), bias (3C,)
    # nn.Linear(embed_dim, embed_dim):   weight (C, C),  bias (C,)
    # Stored pre-transposed (input-major); biases kept 2-D for TPU layout.
    lim1 = 1.0 / math.sqrt(C)
    wqkv_t = jax.random.uniform(kw1, (C, 3 * C), jnp.float32, -lim1, lim1)
    bqkv = jax.random.uniform(kb1, (1, 3 * C), jnp.float32, -lim1, lim1)
    wout_t = jax.random.uniform(kw2, (C, C), jnp.float32, -lim1, lim1)
    bout = jax.random.uniform(kb2, (1, C), jnp.float32, -lim1, lim1)

    out = multi_head_self_attention(x, wqkv_t, bqkv, wout_t, bout,
                                    num_heads=num_heads)
    out = jax.block_until_ready(out)

    ref = reference(x, wqkv_t, bqkv, wout_t, bout, num_heads=num_heads)
    assert out.shape == (B, N, C)
    # bf16 MXU inputs + approximate reciprocal -> ~1e-2-level deviation vs f32 ref.
    assert jnp.allclose(out, ref, atol=3e-2, rtol=3e-2)

    print("KERNEL_OK")
</pallas_src>

<mosaic_0001>
module attributes {stable_mosaic.version = 11 : i64} {
  func.func @mhsa_kernel(%arg0: i32, %arg1: i32, %arg2: i32, %arg3: memref<1x8x32xbf16, #tpu.memory_space<vmem>>, %arg4: memref<1x8x32xbf16, #tpu.memory_space<vmem>>, %arg5: memref<1x32x8xbf16, #tpu.memory_space<vmem>>, %arg6: memref<1x32x8xbf16, #tpu.memory_space<vmem>>, %arg7: memref<1x32x8xbf16, #tpu.memory_space<vmem>>, %arg8: memref<1x1x8xf32, #tpu.memory_space<vmem>>, %arg9: memref<1x1x8xf32, #tpu.memory_space<vmem>>, %arg10: memref<1x1x8xf32, #tpu.memory_space<vmem>>, %arg11: memref<1x8x32xbf16, #tpu.memory_space<vmem>>, %arg12: memref<1x32xf32, #tpu.memory_space<vmem>>, %arg13: memref<1x8x32xf32, #tpu.memory_space<vmem>>, %arg14: memref<8x8xbf16, #tpu.memory_space<vmem>>, %arg15: memref<8x1xf32, #tpu.memory_space<vmem>>, %arg16: memref<8x1xf32, #tpu.memory_space<vmem>>, %arg17: memref<8x8xf32, #tpu.memory_space<vmem>>, %arg18: memref<8x32xf32, #tpu.memory_space<vmem>>) attributes {dimension_semantics = [#tpu.dimension_semantics<parallel>, #tpu.dimension_semantics<arbitrary>, #tpu.dimension_semantics<arbitrary>], iteration_bounds = array<i64: 2, 4, 1>, scalar_prefetch = 0 : i64, scratch_operands = 5 : i64, tpu.core_type = #tpu.core_type<tc>, window_params = [{transform_indices = @transform_0, window_bounds = array<i64: 1, 8, 32>}, {transform_indices = @transform_1, window_bounds = array<i64: 1, 8, 32>}, {transform_indices = @transform_2, window_bounds = array<i64: 1, 32, 8>}, {transform_indices = @transform_3, window_bounds = array<i64: 1, 32, 8>}, {transform_indices = @transform_4, window_bounds = array<i64: 1, 32, 8>}, {transform_indices = @transform_5, window_bounds = array<i64: 1, 1, 8>}, {transform_indices = @transform_6, window_bounds = array<i64: 1, 1, 8>}, {transform_indices = @transform_7, window_bounds = array<i64: 1, 1, 8>}, {transform_indices = @transform_8, window_bounds = array<i64: 1, 8, 32>}, {pipeline_mode = #tpu.pipeline_mode<synchronous>, transform_indices = @transform_9, window_bounds = array<i64: 1, 32>}, {transform_indices = @transform_10, window_bounds = array<i64: 1, 8, 32>}]} {
    %c0_i32 = arith.constant 0 : i32
    %0 = arith.cmpi eq, %arg1, %c0_i32 : i32
    %c0_i32_0 = arith.constant 0 : i32
    %1 = arith.cmpi eq, %arg2, %c0_i32_0 : i32
    %2 = arith.andi %0, %1 : i1
    %3 = arith.extui %2 : i1 to i32
    %c0_i32_1 = arith.constant 0 : i32
    %4 = arith.cmpi ne, %3, %c0_i32_1 : i32
    scf.if %4 {
      %cst_43 = arith.constant 0.000000e+00 : f32
      %60 = vector.broadcast %cst_43 : f32 to vector<8x32xf32>
      %c0_44 = arith.constant 0 : index
      %c0_45 = arith.constant 0 : index
      %61 = vector.load %arg18[%c0_44, %c0_45] : memref<8x32xf32, #tpu.memory_space<vmem>>, vector<8x32xf32>
      tpu.vector_store %arg18[%c0_44, %c0_45], %60 {strides = array<i32>} : memref<8x32xf32, #tpu.memory_space<vmem>>, vector<8x32xf32>,
    } else {
    }
    %c0_i32_2 = arith.constant 0 : i32
    %5 = arith.cmpi eq, %arg2, %c0_i32_2 : i32
    %6 = arith.extui %5 : i1 to i32
    %c0_i32_3 = arith.constant 0 : i32
    %7 = arith.cmpi ne, %6, %c0_i32_3 : i32
    scf.if %7 {
      %c0_43 = arith.constant 0 : index
      %c0_44 = arith.constant 0 : index
      %c0_45 = arith.constant 0 : index
      %60 = vector.load %arg3[%c0_43, %c0_44, %c0_45] : memref<1x8x32xbf16, #tpu.memory_space<vmem>>, vector<1x8x32xbf16>
      %61 = vector.shape_cast %60 : vector<1x8x32xbf16> to vector<8x32xbf16>
      %c0_46 = arith.constant 0 : index
      %c0_47 = arith.constant 0 : index
      %c0_48 = arith.constant 0 : index
      %62 = vector.load %arg5[%c0_46, %c0_47, %c0_48] : memref<1x32x8xbf16, #tpu.memory_space<vmem>>, vector<1x32x8xbf16>
      %63 = vector.shape_cast %62 : vector<1x32x8xbf16> to vector<32x8xbf16>
      %cst_49 = arith.constant dense<0.000000e+00> : vector<8x8xf32>
      %64 = tpu.matmul %61, %63, %cst_49 {dimension_numbers = #tpu.dot_dimension_numbers<[1], [0], [0], [1], [0, 0, 1, 1], [], []>} : vector<8x32xbf16>, vector<32x8xbf16>, vector<8x8xf32> -> vector<8x8xf32>
      %c0_50 = arith.constant 0 : index
      %c0_51 = arith.constant 0 : index
      %c0_52 = arith.constant 0 : index
      %65 = vector.load %arg8[%c0_50, %c0_51, %c0_52] : memref<1x1x8xf32, #tpu.memory_space<vmem>>, vector<1x1x8xf32>
      %66 = vector.shape_cast %65 : vector<1x1x8xf32> to vector<1x8xf32>
      %67 = vector.broadcast %66 : vector<1x8xf32> to vector<8x8xf32>
      %68 = arith.addf %64, %67 : vector<8x8xf32>
      %cst_53 = arith.constant 0.353553385 : f32
      %69 = vector.broadcast %cst_53 : f32 to vector<8x8xf32>
      %70 = arith.mulf %68, %69 : vector<8x8xf32>
      %71 = arith.truncf %70 : vector<8x8xf32> to vector<8x8xbf16>
      %c0_54 = arith.constant 0 : index
      %c0_55 = arith.constant 0 : index
      %72 = vector.load %arg14[%c0_54, %c0_55] : memref<8x8xbf16, #tpu.memory_space<vmem>>, vector<8x8xbf16>
      tpu.vector_store %arg14[%c0_54, %c0_55], %71 {strides = array<i32>} : memref<8x8xbf16, #tpu.memory_space<vmem>>, vector<8x8xbf16>,
      %cst_56 = arith.constant 0xFF800000 : f32
      %73 = vector.broadcast %cst_56 : f32 to vector<8x1xf32>
      %c0_57 = arith.constant 0 : index
      %c0_58 = arith.constant 0 : index
      %74 = vector.load %arg15[%c0_57, %c0_58] : memref<8x1xf32, #tpu.memory_space<vmem>>, vector<8x1xf32>
      tpu.vector_store %arg15[%c0_57, %c0_58], %73 {strides = array<i32>} : memref<8x1xf32, #tpu.memory_space<vmem>>, vector<8x1xf32>,
      %cst_59 = arith.constant 0.000000e+00 : f32
      %75 = vector.broadcast %cst_59 : f32 to vector<8x1xf32>
      %c0_60 = arith.constant 0 : index
      %c0_61 = arith.constant 0 : index
      %76 = vector.load %arg16[%c0_60, %c0_61] : memref<8x1xf32, #tpu.memory_space<vmem>>, vector<8x1xf32>
      tpu.vector_store %arg16[%c0_60, %c0_61], %75 {strides = array<i32>} : memref<8x1xf32, #tpu.memory_space<vmem>>, vector<8x1xf32>,
      %cst_62 = arith.constant 0.000000e+00 : f32
      %77 = vector.broadcast %cst_62 : f32 to vector<8x8xf32>
      %c0_63 = arith.constant 0 : index
      %c0_64 = arith.constant 0 : index
      %78 = vector.load %arg17[%c0_63, %c0_64] : memref<8x8xf32, #tpu.memory_space<vmem>>, vector<8x8xf32>
      tpu.vector_store %arg17[%c0_63, %c0_64], %77 {strides = array<i32>} : memref<8x8xf32, #tpu.memory_space<vmem>>, vector<8x8xf32>,
    } else {
    }
    %c0 = arith.constant 0 : index
    %c0_4 = arith.constant 0 : index
    %c0_5 = arith.constant 0 : index
    %8 = vector.load %arg4[%c0, %c0_4, %c0_5] : memref<1x8x32xbf16, #tpu.memory_space<vmem>>, vector<1x8x32xbf16>
    %9 = vector.shape_cast %8 : vector<1x8x32xbf16> to vector<8x32xbf16>
    %c0_6 = arith.constant 0 : index
    %c0_7 = arith.constant 0 : index
    %c0_8 = arith.constant 0 : index
    %10 = vector.load %arg6[%c0_6, %c0_7, %c0_8] : memref<1x32x8xbf16, #tpu.memory_space<vmem>>, vector<1x32x8xbf16>
    %11 = vector.shape_cast %10 : vector<1x32x8xbf16> to vector<32x8xbf16>
    %cst = arith.constant dense<0.000000e+00> : vector<8x8xf32>
    %12 = tpu.matmul %9, %11, %cst {dimension_numbers = #tpu.dot_dimension_numbers<[1], [0], [0], [1], [0, 0, 1, 1], [], []>} : vector<8x32xbf16>, vector<32x8xbf16>, vector<8x8xf32> -> vector<8x8xf32>
    %c0_9 = arith.constant 0 : index
    %c0_10 = arith.constant 0 : index
    %c0_11 = arith.constant 0 : index
    %13 = vector.load %arg9[%c0_9, %c0_10, %c0_11] : memref<1x1x8xf32, #tpu.memory_space<vmem>>, vector<1x1x8xf32>
    %14 = vector.shape_cast %13 : vector<1x1x8xf32> to vector<1x8xf32>
    %15 = vector.broadcast %14 : vector<1x8xf32> to vector<8x8xf32>
    %16 = arith.addf %12, %15 : vector<8x8xf32>
    %c0_12 = arith.constant 0 : index
    %c0_13 = arith.constant 0 : index
    %c0_14 = arith.constant 0 : index
    %17 = vector.load %arg7[%c0_12, %c0_13, %c0_14] : memref<1x32x8xbf16, #tpu.memory_space<vmem>>, vector<1x32x8xbf16>
    %18 = vector.shape_cast %17 : vector<1x32x8xbf16> to vector<32x8xbf16>
    %cst_15 = arith.constant dense<0.000000e+00> : vector<8x8xf32>
    %19 = tpu.matmul %9, %18, %cst_15 {dimension_numbers = #tpu.dot_dimension_numbers<[1], [0], [0], [1], [0, 0, 1, 1], [], []>} : vector<8x32xbf16>, vector<32x8xbf16>, vector<8x8xf32> -> vector<8x8xf32>
    %c0_16 = arith.constant 0 : index
    %c0_17 = arith.constant 0 : index
    %c0_18 = arith.constant 0 : index
    %20 = vector.load %arg10[%c0_16, %c0_17, %c0_18] : memref<1x1x8xf32, #tpu.memory_space<vmem>>, vector<1x1x8xf32>
    %21 = vector.shape_cast %20 : vector<1x1x8xf32> to vector<1x8xf32>
    %22 = vector.broadcast %21 : vector<1x8xf32> to vector<8x8xf32>
    %23 = arith.addf %19, %22 : vector<8x8xf32>
    %c0_19 = arith.constant 0 : index
    %c0_20 = arith.constant 0 : index
    %24 = vector.load %arg14[%c0_19, %c0_20] : memref<8x8xbf16, #tpu.memory_space<vmem>>, vector<8x8xbf16>
    %25 = arith.truncf %16 : vector<8x8xf32> to vector<8x8xbf16>
    %cst_21 = arith.constant dense<0.000000e+00> : vector<8x8xf32>
    %26 = tpu.matmul %24, %25, %cst_21 {dimension_numbers = #tpu.dot_dimension_numbers<[1], [1], [0], [0], [0, 0, 1, 0], [], []>} : vector<8x8xbf16>, vector<8x8xbf16>, vector<8x8xf32> -> vector<8x8xf32>
    %c0_22 = arith.constant 0 : index
    %c0_23 = arith.constant 0 : index
    %27 = vector.load %arg15[%c0_22, %c0_23] : memref<8x1xf32, #tpu.memory_space<vmem>>, vector<8x1xf32>
    %cst_24 = arith.constant dense<0xFF800000> : vector<8xf32>
    %28 = vector.multi_reduction <maximumf>, %26, %cst_24 [1] : vector<8x8xf32> to vector<8xf32>
    %29 = vector.shape_cast %28 : vector<8xf32> to vector<8x1xf32>
    %30 = arith.maximumf %27, %29 : vector<8x1xf32>
    %c0_25 = arith.constant 0 : index
    %c0_26 = arith.constant 0 : index
    %31 = vector.load %arg15[%c0_25, %c0_26] : memref<8x1xf32, #tpu.memory_space<vmem>>, vector<8x1xf32>
    %32 = arith.subf %31, %30 : vector<8x1xf32>
    %33 = math.exp %32 : vector<8x1xf32>
    %34 = vector.broadcast %30 : vector<8x1xf32> to vector<8x8xf32>
    %35 = arith.subf %26, %34 : vector<8x8xf32>
    %36 = math.exp %35 : vector<8x8xf32>
    %c0_27 = arith.constant 0 : index
    %c0_28 = arith.constant 0 : index
    %37 = vector.load %arg16[%c0_27, %c0_28] : memref<8x1xf32, #tpu.memory_space<vmem>>, vector<8x1xf32>
    %38 = arith.mulf %33, %37 : vector<8x1xf32>
    %cst_29 = arith.constant dense<0.000000e+00> : vector<8xf32>
    %39 = vector.multi_reduction <add>, %36, %cst_29 [1] : vector<8x8xf32> to vector<8xf32>
    %40 = vector.shape_cast %39 : vector<8xf32> to vector<8x1xf32>
    %41 = arith.addf %38, %40 : vector<8x1xf32>
    %c0_30 = arith.constant 0 : index
    %c0_31 = arith.constant 0 : index
    %42 = vector.load %arg16[%c0_30, %c0_31] : memref<8x1xf32, #tpu.memory_space<vmem>>, vector<8x1xf32>
    tpu.vector_store %arg16[%c0_30, %c0_31], %41 {strides = array<i32>} : memref<8x1xf32, #tpu.memory_space<vmem>>, vector<8x1xf32>,
    %c0_32 = arith.constant 0 : index
    %c0_33 = arith.constant 0 : index
    %43 = vector.load %arg17[%c0_32, %c0_33] : memref<8x8xf32, #tpu.memory_space<vmem>>, vector<8x8xf32>
    %44 = vector.broadcast %33 : vector<8x1xf32> to vector<8x8xf32>
    %45 = arith.mulf %44, %43 : vector<8x8xf32>
    %46 = arith.truncf %36 : vector<8x8xf32> to vector<8x8xbf16>
    %47 = arith.truncf %23 : vector<8x8xf32> to vector<8x8xbf16>
    %cst_34 = arith.constant dense<0.000000e+00> : vector<8x8xf32>
    %48 = tpu.matmul %46, %47, %cst_34 {dimension_numbers = #tpu.dot_dimension_numbers<[1], [0], [0], [1], [0, 0, 1, 1], [], []>} : vector<8x8xbf16>, vector<8x8xbf16>, vector<8x8xf32> -> vector<8x8xf32>
    %49 = arith.addf %45, %48 : vector<8x8xf32>
    %c0_35 = arith.constant 0 : index
    %c0_36 = arith.constant 0 : index
    %50 = vector.load %arg17[%c0_35, %c0_36] : memref<8x8xf32, #tpu.memory_space<vmem>>, vector<8x8xf32>
    tpu.vector_store %arg17[%c0_35, %c0_36], %49 {strides = array<i32>} : memref<8x8xf32, #tpu.memory_space<vmem>>, vector<8x8xf32>,
    %c0_37 = arith.constant 0 : index
    %c0_38 = arith.constant 0 : index
    %51 = vector.load %arg15[%c0_37, %c0_38] : memref<8x1xf32, #tpu.memory_space<vmem>>, vector<8x1xf32>
    tpu.vector_store %arg15[%c0_37, %c0_38], %30 {strides = array<i32>} : memref<8x1xf32, #tpu.memory_space<vmem>>, vector<8x1xf32>,
    %c0_i32_39 = arith.constant 0 : i32
    %52 = arith.cmpi eq, %arg2, %c0_i32_39 : i32
    %53 = arith.extui %52 : i1 to i32
    %c0_i32_40 = arith.constant 0 : i32
    %54 = arith.cmpi ne, %53, %c0_i32_40 : i32
    scf.if %54 {
      %c0_43 = arith.constant 0 : index
      %c0_44 = arith.constant 0 : index
      %60 = vector.load %arg17[%c0_43, %c0_44] : memref<8x8xf32, #tpu.memory_space<vmem>>, vector<8x8xf32>
      %c0_45 = arith.constant 0 : index
      %c0_46 = arith.constant 0 : index
      %61 = vector.load %arg16[%c0_45, %c0_46] : memref<8x1xf32, #tpu.memory_space<vmem>>, vector<8x1xf32>
      %62 = tpu.reciprocal %61 {approx = true} : vector<8x1xf32> -> vector<8x1xf32>
      %63 = vector.broadcast %62 : vector<8x1xf32> to vector<8x8xf32>
      %64 = arith.mulf %60, %63 : vector<8x8xf32>
      %c0_47 = arith.constant 0 : index
      %c0_48 = arith.constant 0 : index
      %65 = vector.load %arg18[%c0_47, %c0_48] : memref<8x32xf32, #tpu.memory_space<vmem>>, vector<8x32xf32>
      %66 = arith.truncf %64 : vector<8x8xf32> to vector<8x8xbf16>
      %c0_49 = arith.constant 0 : index
      %c0_50 = arith.constant 0 : index
      %c0_51 = arith.constant 0 : index
      %67 = vector.load %arg11[%c0_49, %c0_50, %c0_51] : memref<1x8x32xbf16, #tpu.memory_space<vmem>>, vector<1x8x32xbf16>
      %68 = vector.shape_cast %67 : vector<1x8x32xbf16> to vector<8x32xbf16>
      %cst_52 = arith.constant dense<0.000000e+00> : vector<8x32xf32>
      %69 = tpu.matmul %66, %68, %cst_52 {dimension_numbers = #tpu.dot_dimension_numbers<[1], [0], [0], [1], [0, 0, 1, 1], [], []>} : vector<8x8xbf16>, vector<8x32xbf16>, vector<8x32xf32> -> vector<8x32xf32>
      %70 = arith.addf %65, %69 : vector<8x32xf32>
      %c0_53 = arith.constant 0 : index
      %c0_54 = arith.constant 0 : index
      %71 = vector.load %arg18[%c0_53, %c0_54] : memref<8x32xf32, #tpu.memory_space<vmem>>, vector<8x32xf32>
      tpu.vector_store %arg18[%c0_53, %c0_54], %70 {strides = array<i32>} : memref<8x32xf32, #tpu.memory_space<vmem>>, vector<8x32xf32>,
    } else {
    }
    %c3_i32 = arith.constant 3 : i32
    %55 = arith.cmpi eq, %arg1, %c3_i32 : i32
    %c0_i32_41 = arith.constant 0 : i32
    %56 = arith.cmpi eq, %arg2, %c0_i32_41 : i32
    %57 = arith.andi %55, %56 : i1
    %58 = arith.extui %57 : i1 to i32
    %c0_i32_42 = arith.constant 0 : i32
    %59 = arith.cmpi ne, %58, %c0_i32_42 : i32
    scf.if %59 {
      %c0_43 = arith.constant 0 : index
      %c0_44 = arith.constant 0 : index
      %60 = vector.load %arg18[%c0_43, %c0_44] : memref<8x32xf32, #tpu.memory_space<vmem>>, vector<8x32xf32>
      %c0_45 = arith.constant 0 : index
      %c0_46 = arith.constant 0 : index
      %61 = vector.load %arg12[%c0_45, %c0_46] : memref<1x32xf32, #tpu.memory_space<vmem>>, vector<1x32xf32>
      %62 = vector.broadcast %61 : vector<1x32xf32> to vector<8x32xf32>
      %63 = arith.addf %60, %62 : vector<8x32xf32>
      %c0_47 = arith.constant 0 : index
      %c0_48 = arith.constant 0 : index
      %c0_49 = arith.constant 0 : index
      %64 = vector.load %arg13[%c0_47, %c0_48, %c0_49] : memref<1x8x32xf32, #tpu.memory_space<vmem>>, vector<1x8x32xf32>
      %65 = vector.shape_cast %64 : vector<1x8x32xf32> to vector<8x32xf32>
      %66 = vector.shape_cast %63 : vector<8x32xf32> to vector<1x8x32xf32>
      tpu.vector_store %arg13[%c0_47, %c0_48, %c0_49], %66 {strides = array<i32>} : memref<1x8x32xf32, #tpu.memory_space<vmem>>, vector<1x8x32xf32>,
    } else {
    }
    return
  }
  func.func @transform_0(%arg0: i32, %arg1: i32, %arg2: i32) -> (i32, i32, i32) {
    %c0_i32 = arith.constant 0 : i32
    %c0_i32_0 = arith.constant 0 : i32
    %c0_i32_1 = arith.constant 0 : i32
    return %arg0, %c0_i32, %c0_i32_0 : i32, i32, i32
  }
  func.func @transform_1(%arg0: i32, %arg1: i32, %arg2: i32) -> (i32, i32, i32) {
    %c0_i32 = arith.constant 0 : i32
    %c0_i32_0 = arith.constant 0 : i32
    return %arg0, %arg2, %c0_i32 : i32, i32, i32
  }
  func.func @transform_2(%arg0: i32, %arg1: i32, %arg2: i32) -> (i32, i32, i32) {
    %c0_i32 = arith.constant 0 : i32
    %c0_i32_0 = arith.constant 0 : i32
    %c0_i32_1 = arith.constant 0 : i32
    return %arg1, %c0_i32, %c0_i32_0 : i32, i32, i32
  }
  func.func @transform_3(%arg0: i32, %arg1: i32, %arg2: i32) -> (i32, i32, i32) {
    %c0_i32 = arith.constant 0 : i32
    %c0_i32_0 = arith.constant 0 : i32
    %c0_i32_1 = arith.constant 0 : i32
    return %arg1, %c0_i32, %c0_i32_0 : i32, i32, i32
  }
  func.func @transform_4(%arg0: i32, %arg1: i32, %arg2: i32) -> (i32, i32, i32) {
    %c0_i32 = arith.constant 0 : i32
    %c0_i32_0 = arith.constant 0 : i32
    %c0_i32_1 = arith.constant 0 : i32
    return %arg1, %c0_i32, %c0_i32_0 : i32, i32, i32
  }
  func.func @transform_5(%arg0: i32, %arg1: i32, %arg2: i32) -> (i32, i32, i32) {
    %c0_i32 = arith.constant 0 : i32
    %c0_i32_0 = arith.constant 0 : i32
    %c0_i32_1 = arith.constant 0 : i32
    return %arg1, %c0_i32, %c0_i32_0 : i32, i32, i32
  }
  func.func @transform_6(%arg0: i32, %arg1: i32, %arg2: i32) -> (i32, i32, i32) {
    %c0_i32 = arith.constant 0 : i32
    %c0_i32_0 = arith.constant 0 : i32
    %c0_i32_1 = arith.constant 0 : i32
    return %arg1, %c0_i32, %c0_i32_0 : i32, i32, i32
  }
  func.func @transform_7(%arg0: i32, %arg1: i32, %arg2: i32) -> (i32, i32, i32) {
    %c0_i32 = arith.constant 0 : i32
    %c0_i32_0 = arith.constant 0 : i32
    %c0_i32_1 = arith.constant 0 : i32
    return %arg1, %c0_i32, %c0_i32_0 : i32, i32, i32
  }
  func.func @transform_8(%arg0: i32, %arg1: i32, %arg2: i32) -> (i32, i32, i32) {
    %c0_i32 = arith.constant 0 : i32
    %c0_i32_0 = arith.constant 0 : i32
    %c0_i32_1 = arith.constant 0 : i32
    return %arg1, %c0_i32, %c0_i32_0 : i32, i32, i32
  }
  func.func @transform_9(%arg0: i32, %arg1: i32, %arg2: i32) -> (i32, i32) {
    %c0_i32 = arith.constant 0 : i32
    %c0_i32_0 = arith.constant 0 : i32
    %c0_i32_1 = arith.constant 0 : i32
    return %c0_i32, %c0_i32_0 : i32, i32
  }
  func.func @transform_10(%arg0: i32, %arg1: i32, %arg2: i32) -> (i32, i32, i32) {
    %c0_i32 = arith.constant 0 : i32
    %c0_i32_0 = arith.constant 0 : i32
    %c0_i32_1 = arith.constant 0 : i32
    return %arg0, %c0_i32, %c0_i32_0 : i32, i32, i32
  }
}

</mosaic_0001>

<llo_original>
// kernel: tpu_custom_call.1
$region0: #{tpu_custom_call.1}
  #allocation0 [shape = 'u32[]', space=smem, size = 0x4, offset = 0x4, fixed_abs, tag = 'smem constant byte address 0x4 - core index']
  #allocation1 [shape = 'u32[144,128]{1,0:T(1,128)}', space=vmem, size = 0x12000, scoped, tag = 'internal scratch']
  #allocation2 [shape = 'bf16[8,8]{1,0:T(8,128)(2,1)}', space=vmem, size = 0x800, scoped, tag = 'scratch operand']
  #allocation3 [shape = 'f32[8,1]{1,0:T(8,128)}', space=vmem, size = 0x1000, scoped, tag = 'scratch operand']
  #allocation4 [shape = 'f32[8,1]{1,0:T(8,128)}', space=vmem, size = 0x1000, scoped, tag = 'scratch operand']
  #allocation5 [shape = 'f32[8,8]{1,0:T(8,128)}', space=vmem, size = 0x1000, scoped, tag = 'scratch operand']
  #allocation6 [shape = 'f32[8,32]{1,0:T(8,128)}', space=vmem, size = 0x1000, scoped, tag = 'scratch operand']
  %s0 = inlined_call_operand.vmem [shape: bf16[2,8,32], index: 0, kind: input, shape index: {}]
  %s1 = inlined_call_operand.vmem [shape: bf16[2,8,32], index: 1, kind: input, shape index: {}]
  %s2 = inlined_call_operand.vmem [shape: bf16[4,32,8], index: 2, kind: input, shape index: {}]
  %s3 = inlined_call_operand.vmem [shape: bf16[4,32,8], index: 3, kind: input, shape index: {}]
  %s4 = inlined_call_operand.vmem [shape: bf16[4,32,8], index: 4, kind: input, shape index: {}]
  %s5 = inlined_call_operand.vmem [shape: f32[4,1,8], index: 5, kind: input, shape index: {}]
  %s6 = inlined_call_operand.vmem [shape: f32[4,1,8], index: 6, kind: input, shape index: {}]
  %s7 = inlined_call_operand.vmem [shape: f32[4,1,8], index: 7, kind: input, shape index: {}]
  %s8 = inlined_call_operand.vmem [shape: bf16[4,8,32], index: 8, kind: input, shape index: {}]
  %s9 = inlined_call_operand.vmem [shape: f32[1,32], index: 9, kind: input, shape index: {}]
  %s10 = inlined_call_operand.hbm [shape: f32[2,8,32], index: 10, kind: output, shape index: {}]
  %s11 = sld [smem:[#allocation0]]
  $region89: #{tpu_custom_call.1} parent=0
    _
  %s13 = ssub.s32 1, %s11
  %s14 = scalar_select 0, %s13, %s11
  $region1: #{tpu_custom_call.1} parent=0
    #allocation7 [shape = 'u8[8192]{0}', space=vmem, size = 0x2000, scoped, tag = 'output window, operand 0']
    #allocation8 [shape = 's32[2]{0}', space=sflag, size = 0x8, scoped, tag = 'scoped memory for tpu_custom_call.1']
    %15 = vsyncpa [#allocation8], 0
    %s16 = scalar_lea.sflag [#allocation8], 1
    %17 = vsyncpa %s16, 0
    loop: start=0, step=1, limit=10
    $region2: #{tpu_custom_call.1} parent=1 // loop_pre_header
      _
    $region3: #{tpu_custom_call.1} parent=1 // loop_header
      %s19 = sphi 0, %s23
      %p20 = scmp.ge.s32.totalorder %s19, 10
      %s26 = sphi 0, %s45
      %s27 = sphi 0, %s41
      %s28 = sphi 0, %s37
      %s29 = sphi 0, %s26
      %s30 = sphi 0, %s27
      %s31 = sphi 0, %s28
      %s32 = sphi 0, %s29
      %s33 = sphi 0, %s30
      %s34 = sphi 0, %s31
      %s48 = sphi 0, %s50
      %s51 = sphi 0, %s48
      %s52 = sphi 0, %s51
      %s68 = sphi 0, %s52
      %s76 = sphi 0, %s78
      %s79 = sphi 0, %s76
      %s80 = sphi 0, %s79
      %s96 = sphi 0, %s80
      %s102 = sphi 0, %s104
      %s105 = sphi 0, %s102
      %s106 = sphi 0, %s105
      %s122 = sphi 0, %s106
      %s128 = sphi 0, %s130
      %s131 = sphi 0, %s128
      %s132 = sphi 0, %s131
      %s148 = sphi 0, %s132
      %s154 = sphi 0, %s156
      %s157 = sphi 0, %s154
      %s158 = sphi 0, %s157
      %s174 = sphi 0, %s158
      %s180 = sphi 0, %s182
      %s183 = sphi 0, %s180
      %s184 = sphi 0, %s183
      %s200 = sphi 0, %s184
      %s206 = sphi 0, %s208
      %s209 = sphi 0, %s206
      %s210 = sphi 0, %s209
      %s226 = sphi 0, %s210
      %s232 = sphi 0, %s234
      %s235 = sphi 0, %s232
      %s236 = sphi 0, %s235
      %s252 = sphi 0, %s236
      %s258 = sphi 0, %s260
      %s261 = sphi 0, %s258
      %s262 = sphi 0, %s261
      %s278 = sphi 0, %s262
      %s282 = sphi 0, %s282
      %s284 = sphi 0, %s282
      %s285 = sphi 0, %s284
      %s299 = sphi 0, %s285
      %s305 = sphi 0, %s307
      %s308 = sphi 0, %s305
      %s309 = sphi 0, %s308
      %s325 = sphi 0, %s309
    $region4: #{tpu_custom_call.1} parent=1 // loop_header_branch
      %22 = sbr.rel (%p20) target = $region8
    $region5: #{tpu_custom_call.1} parent=1 // loop_body
      %s24 = ssub.s32 %s19, 1
      %s25 = ssub.s32 %s19, 2
      %s35 = sadd.s32 1, %s28
      %p36 = scmp.ge.s32.totalorder %s35, 1
      %s37 = scalar_select %p36, 0, %s35
      %s38 = sadd.s32 1, %s27
      %s39 = scalar_select %p36, %s38, %s27
      %p40 = scmp.ge.s32.totalorder %s39, 4
      %s41 = scalar_select %p40, 0, %s39
      %s42 = sadd.s32 1, %s26
      %s43 = scalar_select %p40, %s42, %s26
      %p44 = scmp.ge.s32.totalorder %s43, 2
      %s45 = scalar_select %p44, 0, %s43
      %s46 = ssub.s32 %s26, %s45
      %p47 = scmp.eq.s32.totalorder %s46, 0
      %s49 = sadd.s32 %s48, 1
      %s50 = scalar_select %p47, %s48, %s49
      %p53 = pneg %p47
      %p54 = scmp.eq.s32.totalorder %s19, 7
      %p55 = por %p53, %p54
      %p56 = scmp.ne.s32.totalorder %s48, %s51
      %p57 = scmp.eq.s32.totalorder %s19, 0
      %p58 = por %p56, %p57
      %p59 = scmp.ne.s32.totalorder %s48, %s51
      %p60 = scmp.eq.s32.totalorder %s24, 7
      %p61 = por %p59, %p60
      %p62 = scmp.ne.s32.totalorder %s51, %s52
      %p63 = scmp.eq.s32.totalorder %s24, 0
      %p64 = por %p62, %p63
      %p65 = scmp.ne.s32.totalorder %s51, %s52
      %p66 = scmp.eq.s32.totalorder %s25, 7
      %p67 = por %p65, %p66
      %p69 = scmp.ne.s32.totalorder %s52, %s68
      %p70 = scmp.eq.s32.totalorder %s25, 0
      %p71 = por %p69, %p70
      %s72 = ssub.s32 %s26, %s45
      %s73 = ssub.s32 %s28, %s37
      %s74 = sor.u32 %s72, %s73
      %p75 = scmp.eq.s32.totalorder %s74, 0
      %s77 = sadd.s32 %s76, 1
      %s78 = scalar_select %p75, %s76, %s77
      %p81 = pneg %p75
      %p82 = scmp.eq.s32.totalorder %s19, 7
      %p83 = por %p81, %p82
      %p84 = scmp.ne.s32.totalorder %s76, %s79
      %p85 = scmp.eq.s32.totalorder %s19, 0
      %p86 = por %p84, %p85
      %p87 = scmp.ne.s32.totalorder %s76, %s79
      %p88 = scmp.eq.s32.totalorder %s24, 7
      %p89 = por %p87, %p88
      %p90 = scmp.ne.s32.totalorder %s79, %s80
      %p91 = scmp.eq.s32.totalorder %s24, 0
      %p92 = por %p90, %p91
      %p93 = scmp.ne.s32.totalorder %s79, %s80
      %p94 = scmp.eq.s32.totalorder %s25, 7
      %p95 = por %p93, %p94
      %p97 = scmp.ne.s32.totalorder %s80, %s96
      %p98 = scmp.eq.s32.totalorder %s25, 0
      %p99 = por %p97, %p98
      %s100 = ssub.s32 %s27, %s41
      %p101 = scmp.eq.s32.totalorder %s100, 0
      %s103 = sadd.s32 %s102, 1
      %s104 = scalar_select %p101, %s102, %s103
      %p107 = pneg %p101
      %p108 = scmp.eq.s32.totalorder %s19, 7
      %p109 = por %p107, %p108
      %p110 = scmp.ne.s32.totalorder %s102, %s105
      %p111 = scmp.eq.s32.totalorder %s19, 0
      %p112 = por %p110, %p111
      %p113 = scmp.ne.s32.totalorder %s102, %s105
      %p114 = scmp.eq.s32.totalorder %s24, 7
      %p115 = por %p113, %p114
      %p116 = scmp.ne.s32.totalorder %s105, %s106
      %p117 = scmp.eq.s32.totalorder %s24, 0
      %p118 = por %p116, %p117
      %p119 = scmp.ne.s32.totalorder %s105, %s106
      %p120 = scmp.eq.s32.totalorder %s25, 7
      %p121 = por %p119, %p120
      %p123 = scmp.ne.s32.totalorder %s106, %s122
      %p124 = scmp.eq.s32.totalorder %s25, 0
      %p125 = por %p123, %p124
      %s126 = ssub.s32 %s27, %s41
      %p127 = scmp.eq.s32.totalorder %s126, 0
      %s129 = sadd.s32 %s128, 1
      %s130 = scalar_select %p127, %s128, %s129
      %p133 = pneg %p127
      %p134 = scmp.eq.s32.totalorder %s19, 7
      %p135 = por %p133, %p134
      %p136 = scmp.ne.s32.totalorder %s128, %s131
      %p137 = scmp.eq.s32.totalorder %s19, 0
      %p138 = por %p136, %p137
      %p139 = scmp.ne.s32.totalorder %s128, %s131
      %p140 = scmp.eq.s32.totalorder %s24, 7
      %p141 = por %p139, %p140
      %p142 = scmp.ne.s32.totalorder %s131, %s132
      %p143 = scmp.eq.s32.totalorder %s24, 0
      %p144 = por %p142, %p143
      %p145 = scmp.ne.s32.totalorder %s131, %s132
      %p146 = scmp.eq.s32.totalorder %s25, 7
      %p147 = por %p145, %p146
      %p149 = scmp.ne.s32.totalorder %s132, %s148
      %p150 = scmp.eq.s32.totalorder %s25, 0
      %p151 = por %p149, %p150
      %s152 = ssub.s32 %s27, %s41
      %p153 = scmp.eq.s32.totalorder %s152, 0
      %s155 = sadd.s32 %s154, 1
      %s156 = scalar_select %p153, %s154, %s155
      %p159 = pneg %p153
      %p160 = scmp.eq.s32.totalorder %s19, 7
      %p161 = por %p159, %p160
      %p162 = scmp.ne.s32.totalorder %s154, %s157
      %p163 = scmp.eq.s32.totalorder %s19, 0
      %p164 = por %p162, %p163
      %p165 = scmp.ne.s32.totalorder %s154, %s157
      %p166 = scmp.eq.s32.totalorder %s24, 7
      %p167 = por %p165, %p166
      %p168 = scmp.ne.s32.totalorder %s157, %s158
      %p169 = scmp.eq.s32.totalorder %s24, 0
      %p170 = por %p168, %p169
      %p171 = scmp.ne.s32.totalorder %s157, %s158
      %p172 = scmp.eq.s32.totalorder %s25, 7
      %p173 = por %p171, %p172
      %p175 = scmp.ne.s32.totalorder %s158, %s174
      %p176 = scmp.eq.s32.totalorder %s25, 0
      %p177 = por %p175, %p176
      %s178 = ssub.s32 %s27, %s41
      %p179 = scmp.eq.s32.totalorder %s178, 0
      %s181 = sadd.s32 %s180, 1
      %s182 = scalar_select %p179, %s180, %s181
      %p185 = pneg %p179
      %p186 = scmp.eq.s32.totalorder %s19, 7
      %p187 = por %p185, %p186
      %p188 = scmp.ne.s32.totalorder %s180, %s183
      %p189 = scmp.eq.s32.totalorder %s19, 0
      %p190 = por %p188, %p189
      %p191 = scmp.ne.s32.totalorder %s180, %s183
      %p192 = scmp.eq.s32.totalorder %s24, 7
      %p193 = por %p191, %p192
      %p194 = scmp.ne.s32.totalorder %s183, %s184
      %p195 = scmp.eq.s32.totalorder %s24, 0
      %p196 = por %p194, %p195
      %p197 = scmp.ne.s32.totalorder %s183, %s184
      %p198 = scmp.eq.s32.totalorder %s25, 7
      %p199 = por %p197, %p198
      %p201 = scmp.ne.s32.totalorder %s184, %s200
      %p202 = scmp.eq.s32.totalorder %s25, 0
      %p203 = por %p201, %p202
      %s204 = ssub.s32 %s27, %s41
      %p205 = scmp.eq.s32.totalorder %s204, 0
      %s207 = sadd.s32 %s206, 1
      %s208 = scalar_select %p205, %s206, %s207
      %p211 = pneg %p205
      %p212 = scmp.eq.s32.totalorder %s19, 7
      %p213 = por %p211, %p212
      %p214 = scmp.ne.s32.totalorder %s206, %s209
      %p215 = scmp.eq.s32.totalorder %s19, 0
      %p216 = por %p214, %p215
      %p217 = scmp.ne.s32.totalorder %s206, %s209
      %p218 = scmp.eq.s32.totalorder %s24, 7
      %p219 = por %p217, %p218
      %p220 = scmp.ne.s32.totalorder %s209, %s210
      %p221 = scmp.eq.s32.totalorder %s24, 0
      %p222 = por %p220, %p221
      %p223 = scmp.ne.s32.totalorder %s209, %s210
      %p224 = scmp.eq.s32.totalorder %s25, 7
      %p225 = por %p223, %p224
      %p227 = scmp.ne.s32.totalorder %s210, %s226
      %p228 = scmp.eq.s32.totalorder %s25, 0
      %p229 = por %p227, %p228
      %s230 = ssub.s32 %s27, %s41
      %p231 = scmp.eq.s32.totalorder %s230, 0
      %s233 = sadd.s32 %s232, 1
      %s234 = scalar_select %p231, %s232, %s233
      %p237 = pneg %p231
      %p238 = scmp.eq.s32.totalorder %s19, 7
      %p239 = por %p237, %p238
      %p240 = scmp.ne.s32.totalorder %s232, %s235
      %p241 = scmp.eq.s32.totalorder %s19, 0
      %p242 = por %p240, %p241
      %p243 = scmp.ne.s32.totalorder %s232, %s235
      %p244 = scmp.eq.s32.totalorder %s24, 7
      %p245 = por %p243, %p244
      %p246 = scmp.ne.s32.totalorder %s235, %s236
      %p247 = scmp.eq.s32.totalorder %s24, 0
      %p248 = por %p246, %p247
      %p249 = scmp.ne.s32.totalorder %s235, %s236
      %p250 = scmp.eq.s32.totalorder %s25, 7
      %p251 = por %p249, %p250
      %p253 = scmp.ne.s32.totalorder %s236, %s252
      %p254 = scmp.eq.s32.totalorder %s25, 0
      %p255 = por %p253, %p254
      %s256 = ssub.s32 %s27, %s41
      %p257 = scmp.eq.s32.totalorder %s256, 0
      %s259 = sadd.s32 %s258, 1
      %s260 = scalar_select %p257, %s258, %s259
      %p263 = pneg %p257
      %p264 = scmp.eq.s32.totalorder %s19, 7
      %p265 = por %p263, %p264
      %p266 = scmp.ne.s32.totalorder %s258, %s261
      %p267 = scmp.eq.s32.totalorder %s19, 0
      %p268 = por %p266, %p267
      %p269 = scmp.ne.s32.totalorder %s258, %s261
      %p270 = scmp.eq.s32.totalorder %s24, 7
      %p271 = por %p269, %p270
      %p272 = scmp.ne.s32.totalorder %s261, %s262
      %p273 = scmp.eq.s32.totalorder %s24, 0
      %p274 = por %p272, %p273
      %p275 = scmp.ne.s32.totalorder %s261, %s262
      %p276 = scmp.eq.s32.totalorder %s25, 7
      %p277 = por %p275, %p276
      %p279 = scmp.ne.s32.totalorder %s262, %s278
      %p280 = scmp.eq.s32.totalorder %s25, 0
      %p281 = por %p279, %p280
      %s283 = sadd.s32 %s282, 1
      %p286 = scmp.eq.s32.totalorder %s19, 7
      %p287 = scmp.ne.s32.totalorder %s282, %s284
      %p288 = scmp.eq.s32.totalorder %s19, 0
      %p289 = por %p287, %p288
      %p290 = scmp.ne.s32.totalorder %s282, %s284
      %p291 = scmp.eq.s32.totalorder %s24, 7
      %p292 = por %p290, %p291
      %p293 = scmp.ne.s32.totalorder %s284, %s285
      %p294 = scmp.eq.s32.totalorder %s24, 0
      %p295 = por %p293, %p294
      %p296 = scmp.ne.s32.totalorder %s284, %s285
      %p297 = scmp.eq.s32.totalorder %s25, 7
      %p298 = por %p296, %p297
      %p300 = scmp.ne.s32.totalorder %s285, %s299
      %p301 = scmp.eq.s32.totalorder %s25, 0
      %p302 = por %p300, %p301
      %s303 = ssub.s32 %s26, %s45
      %p304 = scmp.eq.s32.totalorder %s303, 0
      %s306 = sadd.s32 %s305, 1
      %s307 = scalar_select %p304, %s305, %s306
      %p310 = pneg %p304
      %p311 = scmp.eq.s32.totalorder %s19, 7
      %p312 = por %p310, %p311
      %p313 = scmp.ne.s32.totalorder %s305, %s308
      %p314 = scmp.eq.s32.totalorder %s19, 0
      %p315 = por %p313, %p314
      %p316 = scmp.ne.s32.totalorder %s305, %s308
      %p317 = scmp.eq.s32.totalorder %s24, 7
      %p318 = por %p316, %p317
      %p319 = scmp.ne.s32.totalorder %s308, %s309
      %p320 = scmp.eq.s32.totalorder %s24, 0
      %p321 = por %p319, %p320
      %p322 = scmp.ne.s32.totalorder %s308, %s309
      %p323 = scmp.eq.s32.totalorder %s25, 7
      %p324 = por %p322, %p323
      %p326 = scmp.ne.s32.totalorder %s309, %s325
      %p327 = scmp.eq.s32.totalorder %s25, 0
      %p328 = por %p326, %p327
      %p329 = scmp.le.s32.totalorder 1, %s19
      %p330 = scmp.lt.s32.totalorder %s19, 9
      %p331 = pnand %p329, %p330
      %p332 = pneg %p331
      // Predicated region
      $region9: #{tpu_custom_call.1} parent=5 // pred_check
        _
      $region10: #{tpu_custom_call.1} parent=5 // pred_check_branch
        %334 = sbr.rel (%p331) target = $region12
      $region11: #{tpu_custom_call.1} parent=5 // pred_region
        %s335 = ssub.s32 %s19, 1
        // Predicated region
        $region13: #{tpu_custom_call.1} parent=11 // pred_check
          %p336 = pneg %p295
        $region14: #{tpu_custom_call.1} parent=11 // pred_check_branch
          %338 = sbr.rel (%p336) target = $region16
        $region15: #{tpu_custom_call.1} parent=11 // pred_region
          _
        $region16: #{tpu_custom_call.1} parent=11 // pred_fallthru
          _
      $region12: #{tpu_custom_call.1} parent=5 // pred_fallthru
        _
      %p339 = scmp.lt.s32.totalorder %s19, 8
      // Predicated region
      $region17: #{tpu_custom_call.1} parent=5 // pred_check
        %p340 = pneg %p339
      $region18: #{tpu_custom_call.1} parent=5 // pred_check_branch
        %342 = sbr.rel (%p340) target = $region20
      $region19: #{tpu_custom_call.1} parent=5 // pred_region
        // Predicated region
        $region21: #{tpu_custom_call.1} parent=19 // pred_check
          %p343 = pneg %p58
        $region22: #{tpu_custom_call.1} parent=19 // pred_check_branch
          %345 = sbr.rel (%p343) target = $region24
        $region23: #{tpu_custom_call.1} parent=19 // pred_region
          %p346 = scmp.lt.s32.totalorder %s26, 1
          %s347 = scalar_select %p346, %s26, 1
          %s348 = smul.addr %s347, 4
          %s349 = scalar_lea.vmem %s0, %s348
        $region24: #{tpu_custom_call.1} parent=19 // pred_fallthru
          _
        // Predicated region
        $region25: #{tpu_custom_call.1} parent=19 // pred_check
          %p350 = pneg %p86
        $region26: #{tpu_custom_call.1} parent=19 // pred_check_branch
          %352 = sbr.rel (%p350) target = $region28
        $region27: #{tpu_custom_call.1} parent=19 // pred_region
          %p353 = scmp.lt.s32.totalorder %s26, 1
          %s354 = scalar_select %p353, %s26, 1
          %p355 = scmp.lt.s32.totalorder %s28, 0
          %s356 = scalar_select %p355, %s28, 0
          %s357 = sadd.s32 %s356, %s354
          %s358 = smul.addr %s357, 4
          %s359 = scalar_lea.vmem %s1, %s358
        $region28: #{tpu_custom_call.1} parent=19 // pred_fallthru
          _
        // Predicated region
        $region29: #{tpu_custom_call.1} parent=19 // pred_check
          %p360 = pneg %p112
        $region30: #{tpu_custom_call.1} parent=19 // pred_check_branch
          %362 = sbr.rel (%p360) target = $region32
        $region31: #{tpu_custom_call.1} parent=19 // pred_region
          %p363 = scmp.lt.s32.totalorder %s27, 3
          %s364 = scalar_select %p363, %s27, 3
          %s365 = smul.addr %s364, 4
          %s366 = smul.addr %s365, 4
          %s367 = scalar_lea.vmem %s2, %s366
        $region32: #{tpu_custom_call.1} parent=19 // pred_fallthru
          _
        // Predicated region
        $region33: #{tpu_custom_call.1} parent=19 // pred_check
          %p368 = pneg %p138
        $region34: #{tpu_custom_call.1} parent=19 // pred_check_branch
          %370 = sbr.rel (%p368) target = $region36
        $region35: #{tpu_custom_call.1} parent=19 // pred_region
          %p371 = scmp.lt.s32.totalorder %s27, 3
          %s372 = scalar_select %p371, %s27, 3
          %s373 = smul.addr %s372, 4
          %s374 = smul.addr %s373, 4
          %s375 = scalar_lea.vmem %s3, %s374
        $region36: #{tpu_custom_call.1} parent=19 // pred_fallthru
          _
        // Predicated region
        $region37: #{tpu_custom_call.1} parent=19 // pred_check
          %p376 = pneg %p164
        $region38: #{tpu_custom_call.1} parent=19 // pred_check_branch
          %378 = sbr.rel (%p376) target = $region40
        $region39: #{tpu_custom_call.1} parent=19 // pred_region
          %p379 = scmp.lt.s32.totalorder %s27, 3
          %s380 = scalar_select %p379, %s27, 3
          %s381 = smul.addr %s380, 4
          %s382 = smul.addr %s381, 4
          %s383 = scalar_lea.vmem %s4, %s382
        $region40: #{tpu_custom_call.1} parent=19 // pred_fallthru
          _
        // Predicated region
        $region41: #{tpu_custom_call.1} parent=19 // pred_check
          %p384 = pneg %p190
        $region42: #{tpu_custom_call.1} parent=19 // pred_check_branch
          %386 = sbr.rel (%p384) target = $region44
        $region43: #{tpu_custom_call.1} parent=19 // pred_region
          %p387 = scmp.lt.s32.totalorder %s27, 3
          %s388 = scalar_select %p387, %s27, 3
          %s389 = scalar_lea.vmem %s5, %s388
        $region44: #{tpu_custom_call.1} parent=19 // pred_fallthru
          _
        // Predicated region
        $region45: #{tpu_custom_call.1} parent=19 // pred_check
          %p390 = pneg %p216
        $region46: #{tpu_custom_call.1} parent=19 // pred_check_branch
          %392 = sbr.rel (%p390) target = $region48
        $region47: #{tpu_custom_call.1} parent=19 // pred_region
          %p393 = scmp.lt.s32.totalorder %s27, 3
          %s394 = scalar_select %p393, %s27, 3
          %s395 = scalar_lea.vmem %s6, %s394
        $region48: #{tpu_custom_call.1} parent=19 // pred_fallthru
          _
        // Predicated region
        $region49: #{tpu_custom_call.1} parent=19 // pred_check
          %p396 = pneg %p242
        $region50: #{tpu_custom_call.1} parent=19 // pred_check_branch
          %398 = sbr.rel (%p396) target = $region52
        $region51: #{tpu_custom_call.1} parent=19 // pred_region
          %p399 = scmp.lt.s32.totalorder %s27, 3
          %s400 = scalar_select %p399, %s27, 3
          %s401 = scalar_lea.vmem %s7, %s400
        $region52: #{tpu_custom_call.1} parent=19 // pred_fallthru
          _
        // Predicated region
        $region53: #{tpu_custom_call.1} parent=19 // pred_check
          %p402 = pneg %p268
        $region54: #{tpu_custom_call.1} parent=19 // pred_check_branch
          %404 = sbr.rel (%p402) target = $region56
        $region55: #{tpu_custom_call.1} parent=19 // pred_region
          %p405 = scmp.lt.s32.totalorder %s27, 3
          %s406 = scalar_select %p405, %s27, 3
          %s407 = smul.addr %s406, 4
          %s408 = scalar_lea.vmem %s8, %s407
        $region56: #{tpu_custom_call.1} parent=19 // pred_fallthru
          _
      $region20: #{tpu_custom_call.1} parent=5 // pred_fallthru
        _
      %p409 = scmp.le.s32.totalorder 1, %s19
      %p410 = scmp.lt.s32.totalorder %s19, 9
      %p411 = pnand %p409, %p410
      %p412 = pneg %p411
      // Predicated region
      $region57: #{tpu_custom_call.1} parent=5 // pred_check
        _
      $region58: #{tpu_custom_call.1} parent=5 // pred_check_branch
        %414 = sbr.rel (%p411) target = $region60
      $region59: #{tpu_custom_call.1} parent=5 // pred_region
        %s415 = ssub.s32 %s19, 1
        %p416 = scmp.lt.s32.totalorder %s29, 1
        %s417 = scalar_select %p416, %s29, 1
        %s418 = smul.addr %s417, 4
        %s419 = scalar_lea.vmem %s0, %s418
        %p420 = pneg %p64
        %p421 = pneg %p61
        %p422 = scmp.lt.s32.totalorder %s29, 1
        %s423 = scalar_select %p422, %s29, 1
        %p424 = scmp.lt.s32.totalorder %s31, 0
        %s425 = scalar_select %p424, %s31, 0
        %s426 = sadd.s32 %s425, %s423
        %s427 = smul.addr %s426, 4
        %s428 = scalar_lea.vmem %s1, %s427
        %p429 = pneg %p92
        %p430 = pneg %p89
        %p431 = scmp.lt.s32.totalorder %s30, 3
        %s432 = scalar_select %p431, %s30, 3
        %s433 = smul.addr %s432, 4
        %s434 = smul.addr %s433, 4
        %s435 = scalar_lea.vmem %s2, %s434
        %p436 = pneg %p118
        %p437 = pneg %p115
        %p438 = scmp.lt.s32.totalorder %s30, 3
        %s439 = scalar_select %p438, %s30, 3
        %s440 = smul.addr %s439, 4
        %s441 = smul.addr %s440, 4
        %s442 = scalar_lea.vmem %s3, %s441
        %p443 = pneg %p144
        %p444 = pneg %p141
        %p445 = scmp.lt.s32.totalorder %s30, 3
        %s446 = scalar_select %p445, %s30, 3
        %s447 = smul.addr %s446, 4
        %s448 = smul.addr %s447, 4
        %s449 = scalar_lea.vmem %s4, %s448
        %p450 = pneg %p170
        %p451 = pneg %p167
        %p452 = scmp.lt.s32.totalorder %s30, 3
        %s453 = scalar_select %p452, %s30, 3
        %s454 = scalar_lea.vmem %s5, %s453
        %p455 = pneg %p196
        %p456 = pneg %p193
        %p457 = scmp.lt.s32.totalorder %s30, 3
        %s458 = scalar_select %p457, %s30, 3
        %s459 = scalar_lea.vmem %s6, %s458
        %p460 = pneg %p222
        %p461 = pneg %p219
        %p462 = scmp.lt.s32.totalorder %s30, 3
        %s463 = scalar_select %p462, %s30, 3
        %s464 = scalar_lea.vmem %s7, %s463
        %p465 = pneg %p248
        %p466 = pneg %p245
        %p467 = scmp.lt.s32.totalorder %s30, 3
        %s468 = scalar_select %p467, %s30, 3
        %s469 = smul.addr %s468, 4
        %s470 = scalar_lea.vmem %s8, %s469
        %p471 = pneg %p274
        %p472 = pneg %p271
        %p473 = pneg %p295
        %p474 = pneg %p292
        %p475 = pneg %p321
        %p476 = pneg %p318
        %s477 = sand.u32 %s308, 1
        %s478 = scalar_lea.sflag [#allocation8], %s477
        %s479 = sand.u32 %s308, 1
        %s480 = smul.addr %s479, 8
        %s481 = scalar_lea.vmem [#allocation7], %s480
        %p482 = scmp.lt.s32.totalorder %s29, 1
        %s483 = scalar_select %p482, %s29, 1
        %s484 = smul.addr %s483, 4
        %s485 = scalar_lea.vmem %s0, %s484
        %p486 = scmp.lt.s32.totalorder %s29, 1
        %s487 = scalar_select %p486, %s29, 1
        %p488 = scmp.lt.s32.totalorder %s31, 0
        %s489 = scalar_select %p488, %s31, 0
        %s490 = sadd.s32 %s489, %s487
        %s491 = smul.addr %s490, 4
        %s492 = scalar_lea.vmem %s1, %s491
        %p493 = scmp.lt.s32.totalorder %s30, 3
        %s494 = scalar_select %p493, %s30, 3
        %s495 = smul.addr %s494, 4
        %s496 = smul.addr %s495, 4
        %s497 = scalar_lea.vmem %s2, %s496
        %p498 = scmp.lt.s32.totalorder %s30, 3
        %s499 = scalar_select %p498, %s30, 3
        %s500 = smul.addr %s499, 4
        %s501 = smul.addr %s500, 4
        %s502 = scalar_lea.vmem %s3, %s501
        %p503 = scmp.lt.s32.totalorder %s30, 3
        %s504 = scalar_select %p503, %s30, 3
        %s505 = smul.addr %s504, 4
        %s506 = smul.addr %s505, 4
        %s507 = scalar_lea.vmem %s4, %s506
        %p508 = scmp.lt.s32.totalorder %s30, 3
        %s509 = scalar_select %p508, %s30, 3
        %s510 = scalar_lea.vmem %s5, %s509
        %p511 = scmp.lt.s32.totalorder %s30, 3
        %s512 = scalar_select %p511, %s30, 3
        %s513 = scalar_lea.vmem %s6, %s512
        %p514 = scmp.lt.s32.totalorder %s30, 3
        %s515 = scalar_select %p514, %s30, 3
        %s516 = scalar_lea.vmem %s7, %s515
        %p517 = scmp.lt.s32.totalorder %s30, 3
        %s518 = scalar_select %p517, %s30, 3
        %s519 = smul.addr %s518, 4
        %s520 = scalar_lea.vmem %s8, %s519
        %p522 = scmp.eq.s32.totalorder %s30, 0
        %p523 = scmp.eq.s32.totalorder %s31, 0
        %p524 = pnand %p522, %p523
        %p525 = pneg %p524
        // Predicated region
        $region61: #{tpu_custom_call.1} parent=59 // pred_check
          _
        $region62: #{tpu_custom_call.1} parent=59 // pred_check_branch
          %527 = sbr.rel (%p524) target = $region64
        $region63: #{tpu_custom_call.1} parent=59 // pred_region
          %vm528 = vcmask 261120
          %529 = vst.msk [vmem:[#allocation6] sm:$0xff] %vm528, 0.0
        $region64: #{tpu_custom_call.1} parent=59 // pred_fallthru
          _
        // Predicated region
        $region65: #{tpu_custom_call.1} parent=59 // pred_check
          %p530 = pneg %p523
        $region66: #{tpu_custom_call.1} parent=59 // pred_check_branch
          %532 = sbr.rel (%p530) target = $region68
        $region67: #{tpu_custom_call.1} parent=59 // pred_region
          %v533 = vld [vmem:[%s485] sm:$0xf]
          %v534 = vld [vmem:[%s497] sm:$0xf]
          %v535 = vld [vmem:[%s497 + $0x4] sm:$0xf]
          %v536 = vld [vmem:[%s497 + $0x8] sm:$0xf]
          %v537 = vld [vmem:[%s497 + $0xc] sm:$0xf]
          %v538 = vld [vmem:[%s510] sm:$0x1]
          %v540 = vlaneseq
          %v541 = vshrl.u32 %v540, 7
          %v542 = vsub.s32 0, %v541
          %v543 = vrot.slane %v538, %v542
          %v549 = vunpack.c.l.b16 %v534
          %v550 = vunpack.c.l.b16 %v535
          %v551 = vunpack.c.l.b16 %v536
          %v552 = vunpack.c.l.b16 %v537
          %v553 = vpack.c.b16 %v550, %v549
          %v554 = vpack.c.b16 %v552, %v551
          %vm557 = vcmask 261120
          %v559 = vsel %vm557, %v533, 0
          %561 = vmatprep.subr.bf16.mxu0 0
          %562 = vmatpush1.bf16.msra.mxu0 %v553
          %563 = vmatprep.subr.bf16.mxu0 0
          %564 = vmatpush1.bf16.msra.mxu0 %v554
          %565 = vmatprep.subr.bf16.mxu0 0
          %566 = vmatpush1.bf16.msra.mxu0 0
          %567 = vmatprep.subr.bf16.mxu0 0
          %568 = vmatpush1.bf16.msra.mxu0 0
          %569 = vmatprep.subr.bf16.mxu0 0
          %570 = vmatpush1.bf16.msra.mxu0 0
          %571 = vmatprep.subr.bf16.mxu0 0
          %572 = vmatpush1.bf16.msra.mxu0 0
          %573 = vmatprep.subr.bf16.mxu0 0
          %574 = vmatpush1.bf16.msra.mxu0 0
          %575 = vmatprep.subr.bf16.mxu0 0
          %576 = vmatpush1.bf16.msra.mxu0 0
          %577 = vmatprep.subr.bf16.mxu0 0
          %578 = vmatpush1.bf16.msra.mxu0 0
          %579 = vmatprep.subr.bf16.mxu0 0
          %580 = vmatpush1.bf16.msra.mxu0 0
          %581 = vmatprep.subr.bf16.mxu0 0
          %582 = vmatpush1.bf16.msra.mxu0 0
          %583 = vmatprep.subr.bf16.mxu0 0
          %584 = vmatpush1.bf16.msra.mxu0 0
          %585 = vmatprep.subr.bf16.mxu0 0
          %586 = vmatpush1.bf16.msra.mxu0 0
          %587 = vmatprep.subr.bf16.mxu0 0
          %588 = vmatpush1.bf16.msra.mxu0 0
          %589 = vmatprep.subr.bf16.mxu0 0
          %590 = vmatpush1.bf16.msra.mxu0 0
          %591 = vmatprep.subr.bf16.mxu0 0
          %592 = vmatpush1.bf16.msra.mxu0 0
          %593 = vmatprep.mubr.bf16.mxu0 0
          %594 = vmatmul.mubr.bf16.gmra.mrb[0].mxu0 %v559
          %v595 = vpop.f32.mrb[0].mxu0
          %v596 = vadd.f32 %v543, %v595
          %v597 = vpop.f32.mrb[0].mxu0
          %v598 = vpop.f32.mrb[0].mxu0
          %v599 = vpop.f32.mrb[0].mxu0
          %600 = vdwg.mxu0
          %v601 = vmul.f32 %v596, 0.35355338
          %v602 = vpack.c.bf16 %v601, %v601
          %vm603 = vcmask 60416
          %604 = vst.msk [vmem:[#allocation2] sm:$0xf] %vm603, %v602
          %vm605 = vcmask 7168
          %606 = vst.msk [vmem:[#allocation3] sm:$0xff] %vm605, -inf
          %607 = vst.msk [vmem:[#allocation4] sm:$0xff] %vm605, 0.0
          %vm608 = vcmask 64512
          %609 = vst.msk [vmem:[#allocation5] sm:$0xff] %vm608, 0.0
        $region68: #{tpu_custom_call.1} parent=59 // pred_fallthru
          _
        %v610 = vld [vmem:[%s492] sm:$0xf]
        %v611 = vld [vmem:[%s502] sm:$0xf]
        %v612 = vld [vmem:[%s502 + $0x4] sm:$0xf]
        %v613 = vld [vmem:[%s502 + $0x8] sm:$0xf]
        %v614 = vld [vmem:[%s502 + $0xc] sm:$0xf]
        %v615 = vld [vmem:[%s513] sm:$0x1]
        %v617 = vlaneseq
        %v618 = vshrl.u32 %v617, 7
        %v619 = vsub.s32 0, %v618
        %v620 = vrot.slane %v615, %v619
        %v626 = vunpack.c.l.b16 %v611
        %v627 = vunpack.c.l.b16 %v612
        %v628 = vunpack.c.l.b16 %v613
        %v629 = vunpack.c.l.b16 %v614
        %v630 = vpack.c.b16 %v627, %v626
        %v631 = vpack.c.b16 %v629, %v628
        %vm634 = vcmask 261120
        %v636 = vsel %vm634, %v610, 0
        %638 = vmatprep.subr.bf16.mxu0 0
        %639 = vmatpush1.bf16.msra.mxu0 %v630
        %640 = vmatprep.subr.bf16.mxu0 0
        %641 = vmatpush1.bf16.msra.mxu0 %v631
        %642 = vmatprep.subr.bf16.mxu0 0
        %643 = vmatpush1.bf16.msra.mxu0 0
        %644 = vmatprep.subr.bf16.mxu0 0
        %645 = vmatpush1.bf16.msra.mxu0 0
        %646 = vmatprep.subr.bf16.mxu0 0
        %647 = vmatpush1.bf16.msra.mxu0 0
        %648 = vmatprep.subr.bf16.mxu0 0
        %649 = vmatpush1.bf16.msra.mxu0 0
        %650 = vmatprep.subr.bf16.mxu0 0
        %651 = vmatpush1.bf16.msra.mxu0 0
        %652 = vmatprep.subr.bf16.mxu0 0
        %653 = vmatpush1.bf16.msra.mxu0 0
        %654 = vmatprep.subr.bf16.mxu0 0
        %655 = vmatpush1.bf16.msra.mxu0 0
        %656 = vmatprep.subr.bf16.mxu0 0
        %657 = vmatpush1.bf16.msra.mxu0 0
        %658 = vmatprep.subr.bf16.mxu0 0
        %659 = vmatpush1.bf16.msra.mxu0 0
        %660 = vmatprep.subr.bf16.mxu0 0
        %661 = vmatpush1.bf16.msra.mxu0 0
        %662 = vmatprep.subr.bf16.mxu0 0
        %663 = vmatpush1.bf16.msra.mxu0 0
        %664 = vmatprep.subr.bf16.mxu0 0
        %665 = vmatpush1.bf16.msra.mxu0 0
        %666 = vmatprep.subr.bf16.mxu0 0
        %667 = vmatpush1.bf16.msra.mxu0 0
        %668 = vmatprep.subr.bf16.mxu0 0
        %669 = vmatpush1.bf16.msra.mxu0 0
        %670 = vmatprep.mubr.bf16.mxu0 0
        %671 = vmatmul.mubr.bf16.gmra.mrb[0].mxu0 %v636
        %v672 = vpop.f32.mrb[0].mxu0
        %v673 = vadd.f32 %v620, %v672
        %v674 = vpop.f32.mrb[0].mxu0
        %v675 = vpop.f32.mrb[0].mxu0
        %v676 = vpop.f32.mrb[0].mxu0
        %677 = vdwg.mxu0
        %v678 = vld [vmem:[%s507] sm:$0xf]
        %v679 = vld [vmem:[%s507 + $0x4] sm:$0xf]
        %v680 = vld [vmem:[%s507 + $0x8] sm:$0xf]
        %v681 = vld [vmem:[%s507 + $0xc] sm:$0xf]
        %v682 = vld [vmem:[%s516] sm:$0x1]
        %v684 = vlaneseq
        %v685 = vshrl.u32 %v684, 7
        %v686 = vsub.s32 0, %v685
        %v687 = vrot.slane %v682, %v686
        %v693 = vunpack.c.l.b16 %v678
        %v694 = vunpack.c.l.b16 %v679
        %v695 = vunpack.c.l.b16 %v680
        %v696 = vunpack.c.l.b16 %v681
        %v697 = vpack.c.b16 %v694, %v693
        %v698 = vpack.c.b16 %v696, %v695
        %701 = vmatprep.subr.bf16.mxu0 0
        %702 = vmatpush1.bf16.msra.mxu0 %v697
        %703 = vmatprep.subr.bf16.mxu0 0
        %704 = vmatpush1.bf16.msra.mxu0 %v698
        %705 = vmatprep.subr.bf16.mxu0 0
        %706 = vmatpush1.bf16.msra.mxu0 0
        %707 = vmatprep.subr.bf16.mxu0 0
        %708 = vmatpush1.bf16.msra.mxu0 0
        %709 = vmatprep.subr.bf16.mxu0 0
        %710 = vmatpush1.bf16.msra.mxu0 0
        %711 = vmatprep.subr.bf16.mxu0 0
        %712 = vmatpush1.bf16.msra.mxu0 0
        %713 = vmatprep.subr.bf16.mxu0 0
        %714 = vmatpush1.bf16.msra.mxu0 0
        %715 = vmatprep.subr.bf16.mxu0 0
        %716 = vmatpush1.bf16.msra.mxu0 0
        %717 = vmatprep.subr.bf16.mxu0 0
        %718 = vmatpush1.bf16.msra.mxu0 0
        %719 = vmatprep.subr.bf16.mxu0 0
        %720 = vmatpush1.bf16.msra.mxu0 0
        %721 = vmatprep.subr.bf16.mxu0 0
        %722 = vmatpush1.bf16.msra.mxu0 0
        %723 = vmatprep.subr.bf16.mxu0 0
        %724 = vmatpush1.bf16.msra.mxu0 0
        %725 = vmatprep.subr.bf16.mxu0 0
        %726 = vmatpush1.bf16.msra.mxu0 0
        %727 = vmatprep.subr.bf16.mxu0 0
        %728 = vmatpush1.bf16.msra.mxu0 0
        %729 = vmatprep.subr.bf16.mxu0 0
        %730 = vmatpush1.bf16.msra.mxu0 0
        %731 = vmatprep.subr.bf16.mxu0 0
        %732 = vmatpush1.bf16.msra.mxu0 0
        %733 = vmatprep.mubr.bf16.mxu0 0
        %734 = vmatmul.mubr.bf16.gmra.mrb[0].mxu0 %v636
        %v735 = vpop.f32.mrb[0].mxu0
        %v736 = vadd.f32 %v687, %v735
        %v737 = vpop.f32.mrb[0].mxu0
        %v738 = vpop.f32.mrb[0].mxu0
        %v739 = vpop.f32.mrb[0].mxu0
        %740 = vdwg.mxu0
        %v741 = vld [vmem:[#allocation2] sm:$0xf]
        %v742 = vpack.c.bf16 %v673, %v673
        %vm743 = vcmask 64512
        %v745 = vsel %vm743, %v741, 0
        %v748 = vsel %vm743, %v742, 0
        %750 = vmatprep.subr.bf16.mxu0 0
        %751 = vmatpush1.bf16.xpose.msra.mxu0 %v748
        %752 = vmatprep.subr.bf16.mxu0 0
        %753 = vmatpush1.bf16.xpose.msra.mxu0 0
        %754 = vmatprep.subr.bf16.mxu0 0
        %755 = vmatpush1.bf16.xpose.msra.mxu0 0
        %756 = vmatprep.subr.bf16.mxu0 0
        %757 = vmatpush1.bf16.xpose.msra.mxu0 0
        %758 = vmatprep.subr.bf16.mxu0 0
        %759 = vmatpush1.bf16.xpose.msra.mxu0 0
        %760 = vmatprep.subr.bf16.mxu0 0
        %761 = vmatpush1.bf16.xpose.msra.mxu0 0
        %762 = vmatprep.subr.bf16.mxu0 0
        %763 = vmatpush1.bf16.xpose.msra.mxu0 0
        %764 = vmatprep.subr.bf16.mxu0 0
        %765 = vmatpush1.bf16.xpose.msra.mxu0 0
        %766 = vmatprep.subr.bf16.mxu0 0
        %767 = vmatpush1.bf16.xpose.msra.mxu0 0
        %768 = vmatprep.subr.bf16.mxu0 0
        %769 = vmatpush1.bf16.xpose.msra.mxu0 0
        %770 = vmatprep.subr.bf16.mxu0 0
        %771 = vmatpush1.bf16.xpose.msra.mxu0 0
        %772 = vmatprep.subr.bf16.mxu0 0
        %773 = vmatpush1.bf16.xpose.msra.mxu0 0
        %774 = vmatprep.subr.bf16.mxu0 0
        %775 = vmatpush1.bf16.xpose.msra.mxu0 0
        %776 = vmatprep.subr.bf16.mxu0 0
        %777 = vmatpush1.bf16.xpose.msra.mxu0 0
        %778 = vmatprep.subr.bf16.mxu0 0
        %779 = vmatpush1.bf16.xpose.msra.mxu0 0
        %780 = vmatprep.subr.bf16.mxu0 0
        %781 = vmatpush1.bf16.xpose.msra.mxu0 0
        %782 = vmatprep.mubr.bf16.mxu0 0
        %783 = vmatmul.mubr.bf16.gmra.mrb[0].mxu0 %v745
        %v784 = vpop.f32.mrb[0].mxu0
        %v785 = vadd.f32 0.0, %v784
        %v786 = vpop.f32.mrb[0].mxu0
        %v787 = vpop.f32.mrb[0].mxu0
        %v788 = vpop.f32.mrb[0].mxu0
        %789 = vdwg.mxu0
        %v790 = vld [vmem:[#allocation3] sm:$0xff]
        %v791 = vsel %vm743, %v785, -inf
        %792 = vmax.xlane.f32.xlu0 %v791
        %v793 = vpop.xlane.xlu0 %792
        %v794 = vmax.f32 %v790, %v793
        %v795 = vsub.f32 %v790, %v794
        %v796 = vmul.f32 %v795, 1.442695
        %v797 = vpow.pop %v796
        %799 = vset.pattern.permute.xlu0 0
        %800 = vperm.xlu0 %799, %v794
        %v801 = vpop.permute.xlu0 %800
        %v803 = vsub.f32 %v785, %v801
        %v804 = vmul.f32 %v803, 1.442695
        %v805 = vpow.pop %v804
        %v806 = vld [vmem:[#allocation4] sm:$0xff]
        %v807 = vmul.f32 %v797, %v806
        %v808 = vsel %vm743, %v805, 0.0
        %809 = vadd.xlane.f32.xlu0 %v808
        %v810 = vpop.xlane.xlu0 %809
        %v811 = vadd.f32 %v807, %v810
        %vm812 = vcmask 7168
        %813 = vst.msk [vmem:[#allocation4] sm:$0xff] %vm812, %v811
        %v814 = vld [vmem:[#allocation5] sm:$0xff]
        %816 = vset.pattern.permute.xlu0 0
        %817 = vperm.xlu0 %816, %v797
        %v818 = vpop.permute.xlu0 %817
        %v820 = vmul.f32 %v818, %v814
        %v821 = vpack.c.bf16 %v805, %v805
        %v822 = vpack.c.bf16 %v736, %v736
        %v824 = vsel %vm743, %v821, 0
        %vm826 = vcmask 1043456
        %v828 = vsel %vm826, %v822, 0
        %830 = vmatprep.subr.bf16.mxu0 0
        %831 = vmatpush1.bf16.msra.mxu0 %v828
        %832 = vmatprep.subr.bf16.mxu0 0
        %833 = vmatpush1.bf16.msra.mxu0 0
        %834 = vmatprep.subr.bf16.mxu0 0
        %835 = vmatpush1.bf16.msra.mxu0 0
        %836 = vmatprep.subr.bf16.mxu0 0
        %837 = vmatpush1.bf16.msra.mxu0 0
        %838 = vmatprep.subr.bf16.mxu0 0
        %839 = vmatpush1.bf16.msra.mxu0 0
        %840 = vmatprep.subr.bf16.mxu0 0
        %841 = vmatpush1.bf16.msra.mxu0 0
        %842 = vmatprep.subr.bf16.mxu0 0
        %843 = vmatpush1.bf16.msra.mxu0 0
        %844 = vmatprep.subr.bf16.mxu0 0
        %845 = vmatpush1.bf16.msra.mxu0 0
        %846 = vmatprep.subr.bf16.mxu0 0
        %847 = vmatpush1.bf16.msra.mxu0 0
        %848 = vmatprep.subr.bf16.mxu0 0
        %849 = vmatpush1.bf16.msra.mxu0 0
        %850 = vmatprep.subr.bf16.mxu0 0
        %851 = vmatpush1.bf16.msra.mxu0 0
        %852 = vmatprep.subr.bf16.mxu0 0
        %853 = vmatpush1.bf16.msra.mxu0 0
        %854 = vmatprep.subr.bf16.mxu0 0
        %855 = vmatpush1.bf16.msra.mxu0 0
        %856 = vmatprep.subr.bf16.mxu0 0
        %857 = vmatpush1.bf16.msra.mxu0 0
        %858 = vmatprep.subr.bf16.mxu0 0
        %859 = vmatpush1.bf16.msra.mxu0 0
        %860 = vmatprep.subr.bf16.mxu0 0
        %861 = vmatpush1.bf16.msra.mxu0 0
        %862 = vmatprep.mubr.bf16.mxu0 0
        %863 = vmatmul.mubr.bf16.gmra.mrb[0].mxu0 %v824
        %v864 = vpop.f32.mrb[0].mxu0
        %v865 = vadd.f32 0.0, %v864
        %v866 = vpop.f32.mrb[0].mxu0
        %v867 = vpop.f32.mrb[0].mxu0
        %v868 = vpop.f32.mrb[0].mxu0
        %869 = vdwg.mxu0
        %v870 = vadd.f32 %v820, %v865
        %871 = vst.msk [vmem:[#allocation5] sm:$0xff] %vm743, %v870
        %872 = vst.msk [vmem:[#allocation3] sm:$0xff] %vm812, %v794
        // Predicated region
        $region69: #{tpu_custom_call.1} parent=59 // pred_check
          %p873 = pneg %p523
        $region70: #{tpu_custom_call.1} parent=59 // pred_check_branch
          %875 = sbr.rel (%p873) target = $region72
        $region71: #{tpu_custom_call.1} parent=59 // pred_region
          %v876 = vld [vmem:[#allocation5] sm:$0xff]
          %v877 = vld [vmem:[#allocation4] sm:$0xff]
          %v878 = vrcp.pop %v877
          %880 = vset.pattern.permute.xlu0 0
          %881 = vperm.xlu0 %880, %v878
          %v882 = vpop.permute.xlu0 %881
          %v884 = vmul.f32 %v876, %v882
          %v885 = vld [vmem:[#allocation6] sm:$0xff]
          %v886 = vpack.c.bf16 %v884, %v884
          %v887 = vld [vmem:[%s520] sm:$0xf]
          %v889 = vsel %vm743, %v886, 0
          %v892 = vsel %vm826, %v887, 0
          %894 = vmatprep.subr.bf16.mxu0 0
          %895 = vmatpush1.bf16.msra.mxu0 %v892
          %896 = vmatprep.subr.bf16.mxu0 0
          %897 = vmatpush1.bf16.msra.mxu0 0
          %898 = vmatprep.subr.bf16.mxu0 0
          %899 = vmatpush1.bf16.msra.mxu0 0
          %900 = vmatprep.subr.bf16.mxu0 0
          %901 = vmatpush1.bf16.msra.mxu0 0
          %902 = vmatprep.subr.bf16.mxu0 0
          %903 = vmatpush1.bf16.msra.mxu0 0
          %904 = vmatprep.subr.bf16.mxu0 0
          %905 = vmatpush1.bf16.msra.mxu0 0
          %906 = vmatprep.subr.bf16.mxu0 0
          %907 = vmatpush1.bf16.msra.mxu0 0
          %908 = vmatprep.subr.bf16.mxu0 0
          %909 = vmatpush1.bf16.msra.mxu0 0
          %910 = vmatprep.subr.bf16.mxu0 0
          %911 = vmatpush1.bf16.msra.mxu0 0
          %912 = vmatprep.subr.bf16.mxu0 0
          %913 = vmatpush1.bf16.msra.mxu0 0
          %914 = vmatprep.subr.bf16.mxu0 0
          %915 = vmatpush1.bf16.msra.mxu0 0
          %916 = vmatprep.subr.bf16.mxu0 0
          %917 = vmatpush1.bf16.msra.mxu0 0
          %918 = vmatprep.subr.bf16.mxu0 0
          %919 = vmatpush1.bf16.msra.mxu0 0
          %920 = vmatprep.subr.bf16.mxu0 0
          %921 = vmatpush1.bf16.msra.mxu0 0
          %922 = vmatprep.subr.bf16.mxu0 0
          %923 = vmatpush1.bf16.msra.mxu0 0
          %924 = vmatprep.subr.bf16.mxu0 0
          %925 = vmatpush1.bf16.msra.mxu0 0
          %926 = vmatprep.mubr.bf16.mxu0 0
          %927 = vmatmul.mubr.bf16.gmra.mrb[0].mxu0 %v889
          %v928 = vpop.f32.mrb[0].mxu0
          %v929 = vadd.f32 0.0, %v928
          %v930 = vpop.f32.mrb[0].mxu0
          %v931 = vpop.f32.mrb[0].mxu0
          %v932 = vpop.f32.mrb[0].mxu0
          %933 = vdwg.mxu0
          %v934 = vadd.f32 %v885, %v929
          %935 = vst.msk [vmem:[#allocation6] sm:$0xff] %vm634, %v934
        $region72: #{tpu_custom_call.1} parent=59 // pred_fallthru
          _
        %p936 = scmp.eq.s32.totalorder %s30, 3
        %p937 = pnand %p936, %p523
        %p938 = pneg %p937
        // Predicated region
        $region73: #{tpu_custom_call.1} parent=59 // pred_check
          _
        $region74: #{tpu_custom_call.1} parent=59 // pred_check_branch
          %940 = sbr.rel (%p937) target = $region76
        $region75: #{tpu_custom_call.1} parent=59 // pred_region
          %v941 = vld [vmem:[#allocation6] sm:$0xff]
          %v942 = vld [vmem:[%s9] sm:$0x1]
          %v944 = vlaneseq
          %v945 = vshrl.u32 %v944, 7
          %v946 = vsub.s32 0, %v945
          %v947 = vrot.slane %v942, %v946
          %v949 = vadd.f32 %v941, %v947
          %950 = vst.msk [vmem:[%s481] sm:$0xff] %vm634, %v949
        $region76: #{tpu_custom_call.1} parent=59 // pred_fallthru
          _
        %s951 = sand.u32 %s308, 1
        %s952 = scalar_lea.sflag [#allocation8], %s951
        %s953 = sand.u32 %s308, 1
        %s954 = smul.addr %s953, 8
        %s955 = scalar_lea.vmem [#allocation7], %s954
        // Predicated region
        $region77: #{tpu_custom_call.1} parent=59 // pred_check
          %p956 = pneg %p318
        $region78: #{tpu_custom_call.1} parent=59 // pred_check_branch
          %958 = sbr.rel (%p956) target = $region80
        $region79: #{tpu_custom_call.1} parent=59 // pred_region
          %s960 = ssub.s32 128, 128
          %961 = vsyncadd %s952, %s960
          %s962 = smul.addr %s29, 128
          %s963 = scalar_lea.hbm %s10, %s962
          %s965 = sshll.u32 %s955, 4
          %s966 = int_to_ptr.vmem [resolvable:$true] %s965
          %968 = dma.vmem_to_hbm [thread:$0]  %s966, 128, %s963, %s952
        $region80: #{tpu_custom_call.1} parent=59 // pred_fallthru
          _
      $region60: #{tpu_custom_call.1} parent=5 // pred_fallthru
        _
      %p969 = scmp.le.s32.totalorder 2, %s19
      // Predicated region
      $region81: #{tpu_custom_call.1} parent=5 // pred_check
        %p970 = pneg %p969
      $region82: #{tpu_custom_call.1} parent=5 // pred_check_branch
        %972 = sbr.rel (%p970) target = $region84
      $region83: #{tpu_custom_call.1} parent=5 // pred_region
        %s973 = ssub.s32 %s19, 2
        // Predicated region
        $region85: #{tpu_custom_call.1} parent=83 // pred_check
          %p974 = pneg %p324
        $region86: #{tpu_custom_call.1} parent=83 // pred_check_branch
          %976 = sbr.rel (%p974) target = $region88
        $region87: #{tpu_custom_call.1} parent=83 // pred_region
          %s977 = sand.u32 %s309, 1
          %s978 = scalar_lea.sflag [#allocation8], %s977
          %s979 = sand.u32 %s309, 1
          %s980 = smul.addr %s979, 8
          %s981 = scalar_lea.vmem [#allocation7], %s980
          %982 = dma.done %s978, 128
        $region88: #{tpu_custom_call.1} parent=83 // pred_fallthru
          _
      $region84: #{tpu_custom_call.1} parent=5 // pred_fallthru
        _
    $region6: #{tpu_custom_call.1} parent=1 // loop_footer
      %s23 = sadd.s32 1, %s19
    $region7: #{tpu_custom_call.1} parent=1 // loop_footer_branch
      %18 = sbr.rel target = $region3
    $region8: #{tpu_custom_call.1} parent=1 // loop_exit
      _
    %983 = vsyncpa [#allocation8], 1
    %s984 = scalar_lea.sflag [#allocation8], 1
    %985 = vsyncpa %s984, 1

</llo_original>
